<compile_context>
chip_gen: v5e
topology: v5e:2x2
jax: 0.10.0
libtpu: 0.0.40
codegen_flags: <defaults>
</compile_context>

<pallas_src>
import jax
import jax.numpy as jnp
from jax.experimental import pallas as pl
from jax.experimental.pallas import tpu as pltpu


def _mlp_kernel(x_ref, w1_ref, b1_ref, w2_ref, b2_ref, o_ref):
    # fc1: (tile_B, In) @ (In, H) + (1, H) -> ReLU  (bias/ReLU ride free VPU slots)
    h = jnp.dot(x_ref[...], w1_ref[...], preferred_element_type=jnp.float32)
    h = jnp.maximum(h + b1_ref[...], 0.0)
    # fc2: (tile_B, H) @ (H, Out) + (1, Out)
    y = jnp.dot(h, w2_ref[...], preferred_element_type=jnp.float32)
    o_ref[...] = (y + b2_ref[...]).astype(o_ref.dtype)


def _round_up(x, m):
    return ((x + m - 1) // m) * m


def _cdiv(a, b):
    return -(-a // b)


def energy_efficiency_forward(x, w1, b1, w2, b2, *, max_tile_b=4096):
    """Fused MLP forward.

    x:  (B, In)      float32
    w1: (In, H)      float32  (already transposed: in_features first)
    b1: (1, H)       float32
    w2: (H, Out)     float32
    b2: (1, Out)     float32
    returns (B, Out) float32
    """
    B, In = x.shape
    H = w1.shape[1]
    Out = w2.shape[1]

    # Batch tile: multiple of 8 (sublane constraint), capped by max_tile_b.
    max_tile_b = _round_up(max(int(max_tile_b), 8), 8)
    tile_b = min(max_tile_b, _round_up(B, 8))
    num_tiles = _cdiv(B, tile_b)
    if num_tiles > 1 and num_tiles % 2 == 1:
        # Prefer an even tile count so v7x's two TensorCores both get work
        # under the "parallel" batch axis (no-op on single-TC v5e/v6e).
        tile_b = _round_up(_cdiv(B, num_tiles + 1), 8)
        num_tiles = _cdiv(B, tile_b)

    out_shape = jax.ShapeDtypeStruct((B, Out), jnp.float32)

    if num_tiles == 1:
        # Small batch: single invocation, whole arrays resident in VMEM.
        # Avoids the per-grid-step pipeline overhead of a degenerate grid.
        vmem = pl.BlockSpec(memory_space=pltpu.MemorySpace.VMEM)
        return pl.pallas_call(
            _mlp_kernel,
            out_shape=out_shape,
            in_specs=[vmem, vmem, vmem, vmem, vmem],
            out_specs=vmem,
        )(x, w1, b1, w2, b2)

    # Batch-streamed path: x / y stream in tile_b-row blocks (double-buffered
    # by Pallas), W1/b1/W2/b2 stay resident (index_map always (0, 0)).
    # grid = cdiv(B, tile_b); the partial last tile is masked by Pallas.
    return pl.pallas_call(
        _mlp_kernel,
        out_shape=out_shape,
        grid_spec=pltpu.PrefetchScalarGridSpec(
            num_scalar_prefetch=0,
            grid=(num_tiles,),
            in_specs=[
                pl.BlockSpec((tile_b, In), lambda i: (i, 0)),  # streamed x
                pl.BlockSpec((In, H), lambda i: (0, 0)),       # resident W1
                pl.BlockSpec((1, H), lambda i: (0, 0)),        # resident b1
                pl.BlockSpec((H, Out), lambda i: (0, 0)),      # resident W2
                pl.BlockSpec((1, Out), lambda i: (0, 0)),      # resident b2
            ],
            out_specs=pl.BlockSpec((tile_b, Out), lambda i: (i, 0)),
        ),
        compiler_params=pltpu.CompilerParams(
            dimension_semantics=("parallel",),
        ),
    )(x, w1, b1, w2, b2)


def init_params(key, input_size, hidden_size, output_size):
    """Deterministic init mimicking torch.nn.Linear's U(-1/sqrt(fan_in), 1/sqrt(fan_in)).

    All per-call preprocessing is done here once: weights are stored already
    transposed to (in_features, out_features) and biases as (1, features).
    """
    k1, k2, k3, k4 = jax.random.split(key, 4)
    bound1 = 1.0 / jnp.sqrt(input_size)
    bound2 = 1.0 / jnp.sqrt(hidden_size)
    w1 = jax.random.uniform(k1, (input_size, hidden_size), jnp.float32, -bound1, bound1)
    b1 = jax.random.uniform(k2, (1, hidden_size), jnp.float32, -bound1, bound1)
    w2 = jax.random.uniform(k3, (hidden_size, output_size), jnp.float32, -bound2, bound2)
    b2 = jax.random.uniform(k4, (1, output_size), jnp.float32, -bound2, bound2)
    return w1, b1, w2, b2


if __name__ == "__main__":
    # Small shapes consistent with the module: batch=8, input=16, hidden=32, output=4
    batch, input_size, hidden_size, output_size = 8, 16, 32, 4

    key = jax.random.PRNGKey(0)
    kx, kp = jax.random.split(key)
    x = jax.random.normal(kx, (batch, input_size), dtype=jnp.float32)
    w1, b1, w2, b2 = init_params(kp, input_size, hidden_size, output_size)

    def ref_fwd(xx):
        return jnp.maximum(xx @ w1 + b1, 0.0) @ w2 + b2

    # Small-batch (grid-free) path.
    out = jax.block_until_ready(energy_efficiency_forward(x, w1, b1, w2, b2))
    assert out.shape == (batch, output_size)
    assert jnp.allclose(out, ref_fwd(x), atol=1e-5, rtol=1e-5)

    # Batch-streamed grid path with an uneven batch: B=50, tile_b=16 ->
    # grid=(4,) (even, for v7x 2-TC sharding) with a partial last tile.
    x_big = jax.random.normal(kx, (50, input_size), dtype=jnp.float32)
    out_big = jax.block_until_ready(
        energy_efficiency_forward(x_big, w1, b1, w2, b2, max_tile_b=16)
    )
    assert out_big.shape == (50, output_size)
    assert jnp.allclose(out_big, ref_fwd(x_big), atol=1e-5, rtol=1e-5)

    print("KERNEL_OK")
</pallas_src>

<mosaic_0001>
module attributes {stable_mosaic.version = 11 : i64} {
  func.func @_mlp_kernel(%arg0: memref<8x16xf32, #tpu.memory_space<vmem>>, %arg1: memref<16x32xf32, #tpu.memory_space<vmem>>, %arg2: memref<1x32xf32, #tpu.memory_space<vmem>>, %arg3: memref<32x4xf32, #tpu.memory_space<vmem>>, %arg4: memref<1x4xf32, #tpu.memory_space<vmem>>, %arg5: memref<8x4xf32, #tpu.memory_space<vmem>>) attributes {dimension_semantics = [], scalar_prefetch = 0 : i64, scratch_operands = 0 : i64, tpu.core_type = #tpu.core_type<tc>} {
    %c0 = arith.constant 0 : index
    %c0_0 = arith.constant 0 : index
    %0 = vector.load %arg0[%c0, %c0_0] : memref<8x16xf32, #tpu.memory_space<vmem>>, vector<8x16xf32>
    %c0_1 = arith.constant 0 : index
    %c0_2 = arith.constant 0 : index
    %1 = vector.load %arg1[%c0_1, %c0_2] : memref<16x32xf32, #tpu.memory_space<vmem>>, vector<16x32xf32>
    %cst = arith.constant dense<0.000000e+00> : vector<8x32xf32>
    %2 = tpu.matmul %0, %1, %cst {dimension_numbers = #tpu.dot_dimension_numbers<[1], [0], [0], [1], [0, 0, 1, 1], [], []>} : vector<8x16xf32>, vector<16x32xf32>, vector<8x32xf32> -> vector<8x32xf32>
    %c0_3 = arith.constant 0 : index
    %c0_4 = arith.constant 0 : index
    %3 = vector.load %arg2[%c0_3, %c0_4] : memref<1x32xf32, #tpu.memory_space<vmem>>, vector<1x32xf32>
    %4 = vector.broadcast %3 : vector<1x32xf32> to vector<8x32xf32>
    %5 = arith.addf %2, %4 : vector<8x32xf32>
    %cst_5 = arith.constant 0.000000e+00 : f32
    %6 = vector.broadcast %cst_5 : f32 to vector<8x32xf32>
    %7 = arith.maximumf %5, %6 : vector<8x32xf32>
    %c0_6 = arith.constant 0 : index
    %c0_7 = arith.constant 0 : index
    %8 = vector.load %arg3[%c0_6, %c0_7] : memref<32x4xf32, #tpu.memory_space<vmem>>, vector<32x4xf32>
    %cst_8 = arith.constant dense<0.000000e+00> : vector<8x4xf32>
    %9 = tpu.matmul %7, %8, %cst_8 {dimension_numbers = #tpu.dot_dimension_numbers<[1], [0], [0], [1], [0, 0, 1, 1], [], []>} : vector<8x32xf32>, vector<32x4xf32>, vector<8x4xf32> -> vector<8x4xf32>
    %c0_9 = arith.constant 0 : index
    %c0_10 = arith.constant 0 : index
    %10 = vector.load %arg4[%c0_9, %c0_10] : memref<1x4xf32, #tpu.memory_space<vmem>>, vector<1x4xf32>
    %11 = vector.broadcast %10 : vector<1x4xf32> to vector<8x4xf32>
    %12 = arith.addf %9, %11 : vector<8x4xf32>
    %c0_11 = arith.constant 0 : index
    %c0_12 = arith.constant 0 : index
    %13 = vector.load %arg5[%c0_11, %c0_12] : memref<8x4xf32, #tpu.memory_space<vmem>>, vector<8x4xf32>
    tpu.vector_store %arg5[%c0_11, %c0_12], %12 {strides = array<i32>} : memref<8x4xf32, #tpu.memory_space<vmem>>, vector<8x4xf32>,
    return
  }
}

</mosaic_0001>

<llo_original>
// kernel: tpu_custom_call.1
$region0: #{tpu_custom_call.1}
  #allocation0 [shape = 'u32[]', space=smem, size = 0x4, offset = 0x4, fixed_abs, tag = 'smem constant byte address 0x4 - core index']
  #allocation1 [shape = 'u32[72,128]{1,0:T(1,128)}', space=vmem, size = 0x9000, scoped, tag = 'internal scratch']
  %s0 = inlined_call_operand.vmem [shape: f32[8,16], index: 0, kind: input, shape index: {}]
  %s1 = inlined_call_operand.vmem [shape: f32[16,32], index: 1, kind: input, shape index: {}]
  %s2 = inlined_call_operand.vmem [shape: f32[1,32], index: 2, kind: input, shape index: {}]
  %s3 = inlined_call_operand.vmem [shape: f32[32,4], index: 3, kind: input, shape index: {}]
  %s4 = inlined_call_operand.vmem [shape: f32[1,4], index: 4, kind: input, shape index: {}]
  %s5 = inlined_call_operand.vmem [shape: f32[8,4], index: 5, kind: output, shape index: {}]
  %s6 = sld [smem:[#allocation0]]
  $region30: #{tpu_custom_call.1} parent=0
    _
  %s8 = ssub.s32 1, %s6
  %s9 = scalar_select 0, %s8, %s6
  // Predicated region
  $region2: #{tpu_custom_call.1} parent=0 // pred_check
    _
  $region3: #{tpu_custom_call.1} parent=0 // pred_check_branch
    %11 = sbr.rel (0) target = $region5
  $region4: #{tpu_custom_call.1} parent=0 // pred_region
    _
  $region5: #{tpu_custom_call.1} parent=0 // pred_fallthru
    _
  // Predicated region
  $region6: #{tpu_custom_call.1} parent=0 // pred_check
    _
  $region7: #{tpu_custom_call.1} parent=0 // pred_check_branch
    %13 = sbr.rel (0) target = $region9
  $region8: #{tpu_custom_call.1} parent=0 // pred_region
    _
  $region9: #{tpu_custom_call.1} parent=0 // pred_fallthru
    _
  // Predicated region
  $region10: #{tpu_custom_call.1} parent=0 // pred_check
    _
  $region11: #{tpu_custom_call.1} parent=0 // pred_check_branch
    %15 = sbr.rel (0) target = $region13
  $region12: #{tpu_custom_call.1} parent=0 // pred_region
    _
  $region13: #{tpu_custom_call.1} parent=0 // pred_fallthru
    _
  // Predicated region
  $region14: #{tpu_custom_call.1} parent=0 // pred_check
    _
  $region15: #{tpu_custom_call.1} parent=0 // pred_check_branch
    %17 = sbr.rel (0) target = $region17
  $region16: #{tpu_custom_call.1} parent=0 // pred_region
    _
  $region17: #{tpu_custom_call.1} parent=0 // pred_fallthru
    _
  // Predicated region
  $region18: #{tpu_custom_call.1} parent=0 // pred_check
    _
  $region19: #{tpu_custom_call.1} parent=0 // pred_check_branch
    %19 = sbr.rel (0) target = $region21
  $region20: #{tpu_custom_call.1} parent=0 // pred_region
    _
  $region21: #{tpu_custom_call.1} parent=0 // pred_fallthru
    _
  %v20 = vld [vmem:[%s0] sm:$0xff]
  %v21 = vld [vmem:[%s1] sm:$0xff]
  %v22 = vld [vmem:[%s1 + $0x8] sm:$0xff]
  %v23 = vld [vmem:[%s2] sm:$0x1]
  %v25 = vperm.slane %v23, 0
  %vm27 = vcmask 130048
  %v29 = vsel %vm27, %v20, 0
  %31 = vmatpush.msra.mxu0 0.0
  %32 = vmatpush.msra.mxu0 0.0
  %33 = vmatpush.msra.mxu0 0.0
  %34 = vmatpush.msra.mxu0 0.0
  %35 = vmatpush.msra.mxu0 0.0
  %36 = vmatpush.msra.mxu0 0.0
  %37 = vmatpush.msra.mxu0 0.0
  %38 = vmatpush.msra.mxu0 0.0
  %39 = vmatpush.msra.mxu0 0.0
  %40 = vmatpush.msra.mxu0 0.0
  %41 = vmatpush.msra.mxu0 0.0
  %42 = vmatpush.msra.mxu0 0.0
  %43 = vmatpush.msra.mxu0 0.0
  %44 = vmatpush.msra.mxu0 0.0
  %45 = vmatpush.msra.mxu0 %v22
  %46 = vmatpush.msra.mxu0 %v21
  %47 = vmatmul.f32.gmra.mxu0 %v29
  %v48 = vpop.f32.mrf.mxu0
  %v49 = vadd.f32 %v25, %v48
  %50 = vdwg.mxu0
  %v51 = vmax.f32 %v49, 0.0
  %v52 = vld [vmem:[%s3] sm:$0xff]
  %v53 = vld [vmem:[%s3 + $0x8] sm:$0xff]
  %v54 = vld [vmem:[%s3 + $0x10] sm:$0xff]
  %v55 = vld [vmem:[%s3 + $0x18] sm:$0xff]
  %v56 = vld [vmem:[%s4] sm:$0x1]
  %v58 = vperm.slane %v56, 0
  %vm60 = vcmask 261120
  %v62 = vsel %vm60, %v51, 0
  %64 = vmatpush.msra.mxu0 0.0
  %65 = vmatpush.msra.mxu0 0.0
  %66 = vmatpush.msra.mxu0 0.0
  %67 = vmatpush.msra.mxu0 0.0
  %68 = vmatpush.msra.mxu0 0.0
  %69 = vmatpush.msra.mxu0 0.0
  %70 = vmatpush.msra.mxu0 0.0
  %71 = vmatpush.msra.mxu0 0.0
  %72 = vmatpush.msra.mxu0 0.0
  %73 = vmatpush.msra.mxu0 0.0
  %74 = vmatpush.msra.mxu0 0.0
  %75 = vmatpush.msra.mxu0 0.0
  %76 = vmatpush.msra.mxu0 %v55
  %77 = vmatpush.msra.mxu0 %v54
  %78 = vmatpush.msra.mxu0 %v53
  %79 = vmatpush.msra.mxu0 %v52
  %80 = vmatmul.f32.gmra.mxu0 %v62
  %v81 = vpop.f32.mrf.mxu0
  %v82 = vadd.f32 %v58, %v81
  %83 = vdwg.mxu0
  %vm84 = vcmask 31744
  %85 = vst.msk [vmem:[%s5] sm:$0xff] %vm84, %v82
  // Predicated region
  $region22: #{tpu_custom_call.1} parent=0 // pred_check
    _
  $region23: #{tpu_custom_call.1} parent=0 // pred_check_branch
    %87 = sbr.rel (0) target = $region25
  $region24: #{tpu_custom_call.1} parent=0 // pred_region
    _
  $region25: #{tpu_custom_call.1} parent=0 // pred_fallthru
    _
  // Predicated region
  $region26: #{tpu_custom_call.1} parent=0 // pred_check
    _
  $region27: #{tpu_custom_call.1} parent=0 // pred_check_branch
    %89 = sbr.rel (0) target = $region29
  $region28: #{tpu_custom_call.1} parent=0 // pred_region
    _
  $region29: #{tpu_custom_call.1} parent=0 // pred_fallthru
    _

</llo_original>
